<compile_context>
chip_gen: v6e
topology: v6e:2x2x1
jax: 0.10.0
libtpu: 0.0.40
codegen_flags: <defaults>
</compile_context>

<pallas_src>
import math

import jax
import jax.numpy as jnp
from jax.experimental import pallas as pl
from jax.experimental.pallas import tpu as pltpu


# ---------------------------------------------------------------------------
# Hardware introspection (generation-aware limits; safe fallbacks everywhere).
# ---------------------------------------------------------------------------
def _device_kind():
    try:
        return jax.devices()[0].device_kind.lower()
    except Exception:
        return ""


def _is_v7x():
    kind = _device_kind()
    return ("v7" in kind) or ("7x" in kind)


def _vmem_capacity_bytes():
    try:
        cap = getattr(pltpu.get_tpu_info(), "vmem_capacity_bytes", None)
        if cap:
            return int(cap)
    except Exception:
        pass
    return (64 << 20) if _is_v7x() else (128 << 20)


def _sublane_multiple(itemsize):
    # Minimum second-minor tile rows: 8 for 4-byte, 16 for 2-byte, 32 for 1-byte.
    return max(8, 32 // max(1, int(itemsize)))


# ---------------------------------------------------------------------------
# Tiling heuristics.
# ---------------------------------------------------------------------------
def _choose_chunk(D, cap_lanes=2048, max_chunks=8):
    """Lane-axis chunk length used inside the kernel (bounds live f32 data)."""
    if D <= cap_lanes or D % 128 != 0:
        return D  # single chunk (block last dim == full array dim is allowed)
    m = D // 128
    divisors = [d for d in range(1, m + 1) if m % d == 0]
    good = [d for d in divisors if 128 * d <= cap_lanes and (m // d) <= max_chunks]
    if good:
        return 128 * min(good)
    good = [d for d in divisors if (m // d) <= max_chunks]
    return 128 * min(good) if good else D


def _choose_block_rows(rows, num_groups, D, itemsize, chunk,
                       vmem_budget_bytes, min_steps):
    """How many (sample, group) rows each grid step processes."""
    sub = _sublane_multiple(itemsize)
    base = (sub * num_groups) // math.gcd(sub, num_groups)  # lcm(sublane, G)
    if base >= rows:
        return rows
    # Per-row VMEM footprint of one grid step (corrected accounting):
    #   x block + o block, double buffered:          4 * D * itemsize
    #   w/b tables (x.dtype, allocated double-
    #   buffered but DMA'd only once):               4 * D * itemsize
    #   in-kernel f32 live data (~1 chunk of x plus
    #   the normalized chunk / temporaries):         ~3 * chunk * 4
    per_row = 8 * D * itemsize + 3 * chunk * 4
    max_rows = max(base, vmem_budget_bytes // per_row)
    if rows >= min_steps * base:
        # Keep enough grid steps for megacore sharding + per-core pipelining.
        max_rows = min(max_rows, max(base, rows // min_steps))
    r = min(rows, (max_rows // base) * base)
    # No "even division" shrink loop: a ragged final block is cheaper than
    # collapsing R to tiny blocks.
    return max(r, base)


# ---------------------------------------------------------------------------
# Kernel.
# ---------------------------------------------------------------------------
def _make_group_norm_kernel(eps, inv_count, n_chunks, chunk):
    eps = float(eps)
    inv_count = float(inv_count)

    if n_chunks == 1:
        def kernel(x_ref, w_ref, b_ref, o_ref):
            x = x_ref[...].astype(jnp.float32)
            s = jnp.sum(x, axis=-1, keepdims=True)
            sq = jnp.sum(x * x, axis=-1, keepdims=True)
            mean = s * inv_count
            var = jnp.maximum(sq * inv_count - mean * mean, 0.0)
            inv = jax.lax.rsqrt(var + eps)
            w = w_ref[...].astype(jnp.float32)
            b = b_ref[...].astype(jnp.float32)
            o_ref[...] = ((x - mean) * inv * w + b).astype(o_ref.dtype)

        return kernel

    def kernel(x_ref, w_ref, b_ref, o_ref):
        rows = x_ref.shape[0]

        # Pass 1: fused sum / sum-of-squares over lane-axis chunks (f32 acc).
        def stats_body(c, carry):
            s, sq = carry
            off = pl.multiple_of(c * chunk, 128)
            xc = x_ref[:, pl.ds(off, chunk)].astype(jnp.float32)
            return (s + jnp.sum(xc, axis=-1, keepdims=True),
                    sq + jnp.sum(xc * xc, axis=-1, keepdims=True))

        init = (jnp.zeros((rows, 1), jnp.float32),
                jnp.zeros((rows, 1), jnp.float32))
        s, sq = jax.lax.fori_loop(0, n_chunks, stats_body, init, unroll=True)

        mean = s * inv_count
        var = jnp.maximum(sq * inv_count - mean * mean, 0.0)
        inv = jax.lax.rsqrt(var + eps)

        # Pass 2: re-read each chunk, normalize + affine, store lane-dense.
        def apply_body(c, carry):
            off = pl.multiple_of(c * chunk, 128)
            xc = x_ref[:, pl.ds(off, chunk)].astype(jnp.float32)
            wc = w_ref[:, pl.ds(off, chunk)].astype(jnp.float32)
            bc = b_ref[:, pl.ds(off, chunk)].astype(jnp.float32)
            o_ref[:, pl.ds(off, chunk)] = (
                (xc - mean) * inv * wc + bc).astype(o_ref.dtype)
            return carry

        jax.lax.fori_loop(0, n_chunks, apply_body, 0, unroll=True)

    return kernel


# ---------------------------------------------------------------------------
# Wrapper.
# ---------------------------------------------------------------------------
def group_norm(x, num_groups, weight, bias, eps=1e-5):
    """x: NCHW array. weight/bias: (C,) arrays (or None). Matches F.group_norm."""
    N, C, H, W = x.shape
    G = int(num_groups)
    assert C % G == 0, "num_channels must be divisible by num_groups"
    Cg = C // G
    HW = H * W
    D = Cg * HW          # per-group reduction length (lane axis)
    rows = N * G         # one row per (sample, group)

    if weight is None:
        weight = jnp.ones((C,), dtype=x.dtype)
    if bias is None:
        bias = jnp.zeros((C,), dtype=x.dtype)

    x2 = x.reshape(rows, D)
    itemsize = x.dtype.itemsize

    # In-kernel lane chunking (bounds live f32 data).
    chunk = _choose_chunk(D)
    if D % chunk != 0:
        chunk = D
    n_chunks = D // chunk

    # Generation-aware limits.
    vmem_cap = _vmem_capacity_bytes()
    vmem_limit = int(0.75 * vmem_cap)           # headroom for Mosaic scratch
    vmem_budget = min(24 << 20, vmem_limit // 2)
    min_steps = 4 if _is_v7x() else 2

    R = _choose_block_rows(rows, G, D, itemsize, chunk, vmem_budget, min_steps)

    # Per-channel affine expanded into the flattened (row, D) layout, in the
    # INPUT dtype.  Rows are ordered n*G + g and R % G == 0, so within any
    # block local row j maps to group j % G.  Constant index_map below means
    # these tables are DMA'd once and stay VMEM-resident for the whole grid.
    w_flat = jnp.repeat(weight.astype(x.dtype).reshape(G, Cg), HW, axis=1)
    b_flat = jnp.repeat(bias.astype(x.dtype).reshape(G, Cg), HW, axis=1)
    w_tab = jnp.tile(w_flat, (R // G, 1))
    b_tab = jnp.tile(b_flat, (R // G, 1))

    grid = (pl.cdiv(rows, R),)  # ragged final block is fine

    out = pl.pallas_call(
        _make_group_norm_kernel(eps, 1.0 / D, n_chunks, chunk),
        out_shape=jax.ShapeDtypeStruct((rows, D), x.dtype),
        grid_spec=pltpu.PrefetchScalarGridSpec(
            num_scalar_prefetch=0,
            grid=grid,
            in_specs=[
                pl.BlockSpec((R, D), lambda i: (i, 0)),
                pl.BlockSpec((R, D), lambda i: (0, 0)),  # resident, fetched once
                pl.BlockSpec((R, D), lambda i: (0, 0)),  # resident, fetched once
            ],
            out_specs=pl.BlockSpec((R, D), lambda i: (i, 0)),
        ),
        compiler_params=pltpu.CompilerParams(
            dimension_semantics=("parallel",),
            vmem_limit_bytes=vmem_limit,
        ),
    )(x2, w_tab, b_tab)

    return out.reshape(N, C, H, W)


# ---------------------------------------------------------------------------
# Pure-JAX reference (PyTorch F.group_norm semantics).
# ---------------------------------------------------------------------------
def group_norm_reference(x, num_groups, weight, bias, eps=1e-5):
    N, C, H, W = x.shape
    G = num_groups
    xr = x.reshape(N, G, -1).astype(jnp.float32)
    mean = jnp.mean(xr, axis=-1, keepdims=True)
    var = jnp.mean((xr - mean) ** 2, axis=-1, keepdims=True)
    xhat = ((xr - mean) / jnp.sqrt(var + eps)).reshape(N, C, H, W)
    return (xhat * weight.reshape(1, C, 1, 1)
            + bias.reshape(1, C, 1, 1)).astype(x.dtype)


if __name__ == "__main__":
    # Module config (GroupNorm(num_channels=8, num_groups=4)):
    num_channels = 8
    num_groups = 4
    eps = 1e-5

    key = jax.random.PRNGKey(0)
    kx, kw = jax.random.split(key)

    # input: NCHW
    x = jax.random.normal(kx, (2, num_channels, 16, 16), dtype=jnp.float32)

    # deterministic parameter init matching nn.init.uniform_ / zeros_
    weight = jax.random.uniform(kw, (num_channels,), dtype=jnp.float32)
    bias = jnp.zeros((num_channels,), dtype=jnp.float32)

    out = group_norm(x, num_groups, weight, bias, eps)
    out = jax.block_until_ready(out)

    ref = group_norm_reference(x, num_groups, weight, bias, eps)
    assert out.shape == x.shape and out.dtype == x.dtype
    assert jnp.allclose(out, ref, atol=1e-4, rtol=1e-4)

    print("KERNEL_OK")
</pallas_src>

<mosaic_0001>
module attributes {stable_mosaic.version = 11 : i64} {
  func.func @kernel(%arg0: i32, %arg1: memref<8x512xf32, #tpu.memory_space<vmem>>, %arg2: memref<8x512xf32, #tpu.memory_space<vmem>>, %arg3: memref<8x512xf32, #tpu.memory_space<vmem>>, %arg4: memref<8x512xf32, #tpu.memory_space<vmem>>) attributes {dimension_semantics = [#tpu.dimension_semantics<parallel>], iteration_bounds = array<i64: 1>, scalar_prefetch = 0 : i64, scratch_operands = 0 : i64, tpu.core_type = #tpu.core_type<tc>, window_params = [{transform_indices = @transform_0, window_bounds = array<i64: 8, 512>}, {pipeline_mode = #tpu.pipeline_mode<synchronous>, transform_indices = @transform_1, window_bounds = array<i64: 8, 512>}, {pipeline_mode = #tpu.pipeline_mode<synchronous>, transform_indices = @transform_2, window_bounds = array<i64: 8, 512>}, {transform_indices = @transform_3, window_bounds = array<i64: 8, 512>}]} {
    %c0 = arith.constant 0 : index
    %c0_0 = arith.constant 0 : index
    %0 = vector.load %arg1[%c0, %c0_0] : memref<8x512xf32, #tpu.memory_space<vmem>>, vector<8x512xf32>
    %cst = arith.constant dense<0.000000e+00> : vector<8xf32>
    %1 = vector.multi_reduction <add>, %0, %cst [1] : vector<8x512xf32> to vector<8xf32>
    %2 = vector.shape_cast %1 : vector<8xf32> to vector<8x1xf32>
    %3 = arith.mulf %0, %0 : vector<8x512xf32>
    %cst_1 = arith.constant dense<0.000000e+00> : vector<8xf32>
    %4 = vector.multi_reduction <add>, %3, %cst_1 [1] : vector<8x512xf32> to vector<8xf32>
    %5 = vector.shape_cast %4 : vector<8xf32> to vector<8x1xf32>
    %cst_2 = arith.constant 0.001953125 : f32
    %6 = vector.broadcast %cst_2 : f32 to vector<8x1xf32>
    %7 = arith.mulf %2, %6 : vector<8x1xf32>
    %cst_3 = arith.constant 0.001953125 : f32
    %8 = vector.broadcast %cst_3 : f32 to vector<8x1xf32>
    %9 = arith.mulf %5, %8 : vector<8x1xf32>
    %10 = arith.mulf %7, %7 : vector<8x1xf32>
    %11 = arith.subf %9, %10 : vector<8x1xf32>
    %cst_4 = arith.constant 0.000000e+00 : f32
    %12 = vector.broadcast %cst_4 : f32 to vector<8x1xf32>
    %13 = arith.maximumf %11, %12 : vector<8x1xf32>
    %cst_5 = arith.constant 9.99999974E-6 : f32
    %14 = vector.broadcast %cst_5 : f32 to vector<8x1xf32>
    %15 = arith.addf %13, %14 : vector<8x1xf32>
    %16 = math.rsqrt %15 : vector<8x1xf32>
    %c0_6 = arith.constant 0 : index
    %c0_7 = arith.constant 0 : index
    %17 = vector.load %arg2[%c0_6, %c0_7] : memref<8x512xf32, #tpu.memory_space<vmem>>, vector<8x512xf32>
    %c0_8 = arith.constant 0 : index
    %c0_9 = arith.constant 0 : index
    %18 = vector.load %arg3[%c0_8, %c0_9] : memref<8x512xf32, #tpu.memory_space<vmem>>, vector<8x512xf32>
    %19 = vector.broadcast %7 : vector<8x1xf32> to vector<8x512xf32>
    %20 = arith.subf %0, %19 : vector<8x512xf32>
    %21 = vector.broadcast %16 : vector<8x1xf32> to vector<8x512xf32>
    %22 = arith.mulf %20, %21 : vector<8x512xf32>
    %23 = arith.mulf %22, %17 : vector<8x512xf32>
    %24 = arith.addf %23, %18 : vector<8x512xf32>
    %c0_10 = arith.constant 0 : index
    %c0_11 = arith.constant 0 : index
    %25 = vector.load %arg4[%c0_10, %c0_11] : memref<8x512xf32, #tpu.memory_space<vmem>>, vector<8x512xf32>
    tpu.vector_store %arg4[%c0_10, %c0_11], %24 {strides = array<i32>} : memref<8x512xf32, #tpu.memory_space<vmem>>, vector<8x512xf32>,
    return
  }
  func.func @transform_0(%arg0: i32) -> (i32, i32) {
    %c0_i32 = arith.constant 0 : i32
    %c0_i32_0 = arith.constant 0 : i32
    return %arg0, %c0_i32 : i32, i32
  }
  func.func @transform_1(%arg0: i32) -> (i32, i32) {
    %c0_i32 = arith.constant 0 : i32
    %c0_i32_0 = arith.constant 0 : i32
    %c0_i32_1 = arith.constant 0 : i32
    return %c0_i32, %c0_i32_0 : i32, i32
  }
  func.func @transform_2(%arg0: i32) -> (i32, i32) {
    %c0_i32 = arith.constant 0 : i32
    %c0_i32_0 = arith.constant 0 : i32
    %c0_i32_1 = arith.constant 0 : i32
    return %c0_i32, %c0_i32_0 : i32, i32
  }
  func.func @transform_3(%arg0: i32) -> (i32, i32) {
    %c0_i32 = arith.constant 0 : i32
    %c0_i32_0 = arith.constant 0 : i32
    return %arg0, %c0_i32 : i32, i32
  }
}

</mosaic_0001>

<llo_original>
// kernel: tpu_custom_call.1
$region0: #{tpu_custom_call.1}
  #allocation0 [shape = 'u32[]', space=smem, size = 0x4, offset = 0x4, fixed_abs, tag = 'smem constant byte address 0x4 - core index']
  #allocation1 [shape = 'u32[144,128]{1,0:T(1,128)}', space=vmem, size = 0x12000, scoped, tag = 'internal scratch']
  %s0 = inlined_call_operand.hbm [shape: f32[8,512], index: 0, kind: input, shape index: {}]
  %s1 = inlined_call_operand.hbm [shape: f32[8,512], index: 1, kind: input, shape index: {}]
  %s2 = inlined_call_operand.hbm [shape: f32[8,512], index: 2, kind: input, shape index: {}]
  %s3 = inlined_call_operand.hbm [shape: f32[8,512], index: 3, kind: output, shape index: {}]
  %s4 = sld [smem:[#allocation0]]
  $region34: #{tpu_custom_call.1} parent=0
    _
  %s6 = ssub.s32 1, %s4
  %s7 = scalar_select 0, %s6, %s4
  $region1: #{tpu_custom_call.1} parent=0
    #allocation2 [shape = 'u8[16384]{0}', space=vmem, size = 0x4000, scoped, tag = 'input window, operand 0, single buffered']
    #allocation3 [shape = 's32[1]{0}', space=sflag, size = 0x4, scoped, tag = 'scoped memory for tpu_custom_call.1']
    #allocation4 [shape = 's32[1]{0}', space=sflag, size = 0x4, scoped, tag = 'scoped memory for tpu_custom_call.1']
    #allocation5 [shape = 'u8[16384]{0}', space=vmem, size = 0x4000, scoped, tag = 'input window, operand 1, single buffered']
    #allocation6 [shape = 's32[1]{0}', space=sflag, size = 0x4, scoped, tag = 'scoped memory for tpu_custom_call.1']
    #allocation7 [shape = 'u8[16384]{0}', space=vmem, size = 0x4000, scoped, tag = 'input window, operand 2, single buffered']
    #allocation8 [shape = 'u8[16384]{0}', space=vmem, size = 0x4000, scoped, tag = 'output window, operand 0, single buffered']
    %8 = vsyncpa [#allocation3], 0
    %9 = vsyncpa [#allocation6], 0
    %10 = vsyncpa [#allocation4], 0
    // Predicated region
    $region2: #{tpu_custom_call.1} parent=1 // pred_check
      _
    $region3: #{tpu_custom_call.1} parent=1 // pred_check_branch
      %12 = sbr.rel (0) target = $region5
    $region4: #{tpu_custom_call.1} parent=1 // pred_region
      %s14 = ssub.s32 512, 512
      %15 = vsyncadd [#allocation3], %s14
      %s17 = sshll.u32 [#allocation2], 4
      %s18 = int_to_ptr.vmem [resolvable:$true] %s17
      %20 = dma.hbm_to_vmem [thread:$0]  %s0, 512, %s18, [#allocation3]
    $region5: #{tpu_custom_call.1} parent=1 // pred_fallthru
      _
    // Predicated region
    $region6: #{tpu_custom_call.1} parent=1 // pred_check
      _
    $region7: #{tpu_custom_call.1} parent=1 // pred_check_branch
      %22 = sbr.rel (0) target = $region9
    $region8: #{tpu_custom_call.1} parent=1 // pred_region
      %s24 = ssub.s32 512, 512
      %25 = vsyncadd [#allocation6], %s24
      %s27 = sshll.u32 [#allocation5], 4
      %s28 = int_to_ptr.vmem [resolvable:$true] %s27
      %30 = dma.hbm_to_vmem [thread:$0]  %s1, 512, %s28, [#allocation6]
    $region9: #{tpu_custom_call.1} parent=1 // pred_fallthru
      _
    // Predicated region
    $region10: #{tpu_custom_call.1} parent=1 // pred_check
      _
    $region11: #{tpu_custom_call.1} parent=1 // pred_check_branch
      %32 = sbr.rel (0) target = $region13
    $region12: #{tpu_custom_call.1} parent=1 // pred_region
      %s34 = ssub.s32 512, 512
      %35 = vsyncadd [#allocation6], %s34
      %s37 = sshll.u32 [#allocation7], 4
      %s38 = int_to_ptr.vmem [resolvable:$true] %s37
      %40 = dma.hbm_to_vmem [thread:$0]  %s2, 512, %s38, [#allocation6]
    $region13: #{tpu_custom_call.1} parent=1 // pred_fallthru
      _
    // Predicated region
    $region14: #{tpu_custom_call.1} parent=1 // pred_check
      _
    $region15: #{tpu_custom_call.1} parent=1 // pred_check_branch
      %42 = sbr.rel (0) target = $region17
    $region16: #{tpu_custom_call.1} parent=1 // pred_region
      %43 = dma.done [#allocation3], 512
    $region17: #{tpu_custom_call.1} parent=1 // pred_fallthru
      _
    // Predicated region
    $region18: #{tpu_custom_call.1} parent=1 // pred_check
      _
    $region19: #{tpu_custom_call.1} parent=1 // pred_check_branch
      %45 = sbr.rel (0) target = $region21
    $region20: #{tpu_custom_call.1} parent=1 // pred_region
      %46 = dma.done [#allocation6], 512
    $region21: #{tpu_custom_call.1} parent=1 // pred_fallthru
      _
    // Predicated region
    $region22: #{tpu_custom_call.1} parent=1 // pred_check
      _
    $region23: #{tpu_custom_call.1} parent=1 // pred_check_branch
      %48 = sbr.rel (0) target = $region25
    $region24: #{tpu_custom_call.1} parent=1 // pred_region
      %49 = dma.done [#allocation6], 512
    $region25: #{tpu_custom_call.1} parent=1 // pred_fallthru
      _
    %v50 = vld [vmem:[#allocation2] sm:$0xff]
    %v51 = vld [vmem:[#allocation2 + $0x8] sm:$0xff]
    %v52 = vld [vmem:[#allocation2 + $0x10] sm:$0xff]
    %v53 = vld [vmem:[#allocation2 + $0x18] sm:$0xff]
    %v54 = vadd.f32 %v50, %v51
    %v55 = vadd.f32 %v54, %v52
    %v56 = vadd.f32 %v55, %v53
    %57 = vadd.xlane.f32.xlu0 %v56
    %v58 = vpop.xlane.xlu0 %57
    %v59 = vmul.f32 %v50, %v50
    %v60 = vmul.f32 %v51, %v51
    %v61 = vmul.f32 %v52, %v52
    %v62 = vmul.f32 %v53, %v53
    %v63 = vadd.f32 %v59, %v60
    %v64 = vadd.f32 %v63, %v61
    %v65 = vadd.f32 %v64, %v62
    %66 = vadd.xlane.f32.xlu0 %v65
    %v67 = vpop.xlane.xlu0 %66
    %v68 = vmul.f32 %v58, 0.001953125
    %v69 = vmul.f32 %v67, 0.001953125
    %v70 = vmul.f32 %v68, %v68
    %v71 = vsub.f32 %v69, %v70
    %v72 = vmax.f32 %v71, 0.0
    %v73 = vadd.f32 %v72, 1e-05
    %v74 = vrsqrt.pop %v73
    %v75 = vld [vmem:[#allocation5] sm:$0xff]
    %v76 = vld [vmem:[#allocation5 + $0x8] sm:$0xff]
    %v77 = vld [vmem:[#allocation5 + $0x10] sm:$0xff]
    %v78 = vld [vmem:[#allocation5 + $0x18] sm:$0xff]
    %v79 = vld [vmem:[#allocation7] sm:$0xff]
    %v80 = vld [vmem:[#allocation7 + $0x8] sm:$0xff]
    %v81 = vld [vmem:[#allocation7 + $0x10] sm:$0xff]
    %v82 = vld [vmem:[#allocation7 + $0x18] sm:$0xff]
    %v83 = vsub.f32 %v50, %v68
    %v84 = vsub.f32 %v51, %v68
    %v85 = vsub.f32 %v52, %v68
    %v86 = vsub.f32 %v53, %v68
    %v87 = vmul.f32 %v83, %v74
    %v88 = vmul.f32 %v84, %v74
    %v89 = vmul.f32 %v85, %v74
    %v90 = vmul.f32 %v86, %v74
    %v91 = vmul.f32 %v87, %v75
    %v92 = vmul.f32 %v88, %v76
    %v93 = vmul.f32 %v89, %v77
    %v94 = vmul.f32 %v90, %v78
    %v95 = vadd.f32 %v91, %v79
    %v96 = vadd.f32 %v92, %v80
    %v97 = vadd.f32 %v93, %v81
    %v98 = vadd.f32 %v94, %v82
    %99 = vst [vmem:[#allocation8] sm:$0xff] %v95
    %100 = vst [vmem:[#allocation8 + $0x8] sm:$0xff] %v96
    %101 = vst [vmem:[#allocation8 + $0x10] sm:$0xff] %v97
    %102 = vst [vmem:[#allocation8 + $0x18] sm:$0xff] %v98
    // Predicated region
    $region26: #{tpu_custom_call.1} parent=1 // pred_check
      _
    $region27: #{tpu_custom_call.1} parent=1 // pred_check_branch
      %104 = sbr.rel (0) target = $region29
    $region28: #{tpu_custom_call.1} parent=1 // pred_region
      %s106 = ssub.s32 512, 512
      %107 = vsyncadd [#allocation4], %s106
      %s109 = sshll.u32 [#allocation8], 4
      %s110 = int_to_ptr.vmem [resolvable:$true] %s109
      %112 = dma.vmem_to_hbm [thread:$0]  %s110, 512, %s3, [#allocation4]
    $region29: #{tpu_custom_call.1} parent=1 // pred_fallthru
      _
    // Predicated region
    $region30: #{tpu_custom_call.1} parent=1 // pred_check
      _
    $region31: #{tpu_custom_call.1} parent=1 // pred_check_branch
      %114 = sbr.rel (0) target = $region33
    $region32: #{tpu_custom_call.1} parent=1 // pred_region
      %115 = dma.done [#allocation4], 512
    $region33: #{tpu_custom_call.1} parent=1 // pred_fallthru
      _
    %116 = vsyncpa [#allocation3], 1
    %117 = vsyncpa [#allocation6], 1
    %118 = vsyncpa [#allocation4], 1

</llo_original>
